<compile_context>
chip_gen: v6e
topology: v6e:2x2x1
jax: 0.10.0
libtpu: 0.0.40
codegen_flags: <defaults>
</compile_context>

<pallas_src>
import math

import jax
import jax.numpy as jnp
from jax import lax
from jax.experimental import pallas as pl
from jax.experimental.pallas import tpu as pltpu


_TARGET_BLOCK_BYTES = 4 * 1024 * 1024   # ~4 MiB of HBM traffic per input block
_SMALL_N_FALLBACK = 1 << 18             # below this, plain XLA wins


def _cdiv(a, b):
    return -(-a // b)


def _round_up(x, m):
    return ((x + m - 1) // m) * m


def _make_l1_kernel(*, rows, tm, lanes, steps_per_split, needs_mask):
    """Sums |a - b| over (tm, lanes) blocks into a resident (1, 8, lanes) output."""

    def kernel(a_ref, b_ref, out_ref):
        i = pl.program_id(1)

        @pl.when(i == 0)
        def _init():
            out_ref[...] = jnp.zeros_like(out_ref)

        a = a_ref[...].astype(jnp.float32)
        b = b_ref[...].astype(jnp.float32)
        d = jnp.abs(a - b)

        if needs_mask:
            # Rows at/after `rows` are out-of-bounds garbage (partial last
            # block, or a clamped duplicate block on the dual-core split):
            # zero them before accumulating.  (tm, 1) column mask -> tiny
            # iota, lane-broadcast select; fully hidden under the block DMA.
            c = pl.program_id(0)
            row0 = (c * steps_per_split + i) * tm
            row_ids = row0 + lax.broadcasted_iota(jnp.int32, (tm, 1), 0)
            d = jnp.where(row_ids < rows, d, 0.0)

        # Fold the (tm, lanes) block into the resident (8, lanes) accumulator
        # using only vreg adds (reduction over a major axis, no cross-lane XLU).
        out_ref[0] = out_ref[0] + d.reshape(tm // 8, 8, lanes).sum(axis=0)

    return kernel


def chg_loss(yst0, yst, *, min_pallas_elements=_SMALL_N_FALLBACK, block_rows=None):
    """Mean absolute error (PyTorch nn.L1Loss) between two same-shape tensors."""
    assert yst0.shape == yst.shape, "target and source must match shapes"
    n_total = math.prod(yst0.shape) if yst0.shape else 1

    a_flat = yst0.reshape(-1)
    b_flat = yst.reshape(-1)

    # Lane-dense width: prefer 512, fall back to 256/128 if they divide n_total
    # exactly (keeps the reshape a pure bitcast); otherwise use 512 and send the
    # < lanes ragged tail through the XLA epilogue below.
    lanes = next((c for c in (512, 256, 128) if n_total % c == 0), 512)
    rows = n_total // lanes

    if n_total < max(int(min_pallas_elements), 1) or rows == 0:
        # Tiny input: pallas_call launch overhead dominates; plain XLA is faster.
        d = jnp.abs(a_flat.astype(jnp.float32) - b_flat.astype(jnp.float32))
        return jnp.sum(d, dtype=jnp.float32) / jnp.float32(n_total)

    bulk = rows * lanes

    # Dtype-aware tiling: target ~4 MiB of HBM per input block; sublane multiple
    # follows the narrowest input dtype (8 for f32, 16 for bf16, 32 for 1-byte).
    it_a = jnp.dtype(yst0.dtype).itemsize
    it_b = jnp.dtype(yst.dtype).itemsize
    sub = 32 // min(it_a, it_b, 4)
    if block_rows is None:
        row_tile = _TARGET_BLOCK_BYTES // (lanes * max(it_a, it_b, 1))
    else:
        row_tile = int(block_rows)
    row_tile = max(sub, (row_tile // sub) * sub)
    tm = min(row_tile, _round_up(rows, sub))
    steps_total = _cdiv(rows, tm)

    # Generation-aware knobs.
    kind = ""
    try:
        kind = jax.devices()[0].device_kind.lower()
    except Exception:
        pass
    is_v7 = "v7" in kind
    vmem_limit = (48 if is_v7 else 80) * 1024 * 1024

    # Bulk view: a pure bitcast when bulk == n_total (no pad, no copy).
    if bulk == n_total:
        a2 = a_flat.reshape(rows, lanes)
        b2 = b_flat.reshape(rows, lanes)
    else:
        a2 = a_flat[:bulk].reshape(rows, lanes)
        b2 = b_flat[:bulk].reshape(rows, lanes)

    def launch(splits, leading_sem):
        sps = _cdiv(steps_total, splits)
        last = steps_total - 1
        needs_clamp = splits * sps > steps_total
        if needs_clamp:
            in_map = lambda c, i: (jnp.minimum(c * sps + i, last), 0)
        else:
            in_map = lambda c, i: (c * sps + i, 0)
        needs_mask = splits * sps * tm > rows

        kernel = _make_l1_kernel(rows=rows, tm=tm, lanes=lanes,
                                 steps_per_split=sps, needs_mask=needs_mask)
        in_spec = pl.BlockSpec((tm, lanes), in_map)
        return pl.pallas_call(
            kernel,
            out_shape=jax.ShapeDtypeStruct((splits, 8, lanes), jnp.float32),
            grid=(splits, sps),
            in_specs=[in_spec, in_spec],
            out_specs=pl.BlockSpec((1, 8, lanes), lambda c, i: (c, 0, 0)),
            compiler_params=pltpu.CompilerParams(
                dimension_semantics=(leading_sem, pltpu.ARBITRARY),
                vmem_limit_bytes=vmem_limit,
            ),
        )(a2, b2)

    if is_v7 and steps_total >= 2:
        # v7x: shard the stream across both TensorCores (each has its own DMA
        # path to HBM).  Fall back to the portable single-split build if this
        # configuration is rejected by the compiler.
        try:
            partials = launch(2, pltpu.CORE_PARALLEL)
        except Exception:
            partials = launch(1, pltpu.ARBITRARY)
    else:
        partials = launch(1, pltpu.ARBITRARY)

    total = jnp.sum(partials, dtype=jnp.float32)

    if bulk != n_total:
        # Ragged tail (< lanes elements): negligible extra HBM traffic.
        at = a_flat[bulk:].astype(jnp.float32)
        bt = b_flat[bulk:].astype(jnp.float32)
        total = total + jnp.sum(jnp.abs(at - bt), dtype=jnp.float32)

    return total / jnp.float32(n_total)


if __name__ == "__main__":
    key = jax.random.PRNGKey(0)
    ks = jax.random.split(key, 8)

    def ref_l1(a, b):
        a32 = a.astype(jnp.float32)
        b32 = b.astype(jnp.float32)
        return jnp.sum(jnp.abs(a32 - b32)) / a.size

    # 1) Small shapes consistent with the module -> small-N XLA fallback path.
    a = jax.random.normal(ks[0], (2, 4, 16, 16), dtype=jnp.float32)
    b = jax.random.normal(ks[1], (2, 4, 16, 16), dtype=jnp.float32)
    out = chg_loss(a, b)
    jax.block_until_ready(out)
    assert jnp.allclose(out, ref_l1(a, b), rtol=1e-5, atol=1e-6), (out, ref_l1(a, b))

    # 2) Same inputs forced through the Pallas kernel: rows=4 < one 8-row block,
    #    exercises the in-kernel partial-block row mask (no padding anywhere).
    out = chg_loss(a, b, min_pallas_elements=0)
    jax.block_until_ready(out)
    assert jnp.allclose(out, ref_l1(a, b), rtol=1e-5, atol=1e-6), (out, ref_l1(a, b))

    # 3) Awkward element count (945): bulk kernel + ragged-tail XLA epilogue.
    c0 = jax.random.normal(ks[2], (3, 5, 7, 9), dtype=jnp.float32)
    c1 = jax.random.normal(ks[3], (3, 5, 7, 9), dtype=jnp.float32)
    out = chg_loss(c0, c1, min_pallas_elements=0)
    jax.block_until_ready(out)
    assert jnp.allclose(out, ref_l1(c0, c1), rtol=1e-5, atol=1e-6), (out, ref_l1(c0, c1))

    # 4) Multi-step resident-output accumulation: rows=128 with 32-row blocks
    #    -> 4 grid steps over the same (8, 512) accumulator block.
    d0 = jax.random.normal(ks[4], (2, 4, 64, 128), dtype=jnp.float32)
    d1 = jax.random.normal(ks[5], (2, 4, 64, 128), dtype=jnp.float32)
    out = chg_loss(d0, d1, min_pallas_elements=0, block_rows=32)
    jax.block_until_ready(out)
    assert jnp.allclose(out, ref_l1(d0, d1), rtol=1e-5, atol=1e-6), (out, ref_l1(d0, d1))

    # 5) bf16 inputs: dtype-aware tiling (16-row sublane multiple), f32 accumulation.
    e0 = jax.random.normal(ks[6], (2, 4, 64, 128), dtype=jnp.bfloat16)
    e1 = jax.random.normal(ks[7], (2, 4, 64, 128), dtype=jnp.bfloat16)
    out = chg_loss(e0, e1, min_pallas_elements=0)
    jax.block_until_ready(out)
    assert jnp.allclose(out, ref_l1(e0, e1), rtol=1e-4, atol=1e-5), (out, ref_l1(e0, e1))

    print("KERNEL_OK")
</pallas_src>

<mosaic_0001>
module attributes {stable_mosaic.version = 11 : i64} {
  func.func @kernel(%arg0: i32, %arg1: i32, %arg2: memref<8x512xf32, #tpu.memory_space<vmem>>, %arg3: memref<8x512xf32, #tpu.memory_space<vmem>>, %arg4: memref<1x8x512xf32, #tpu.memory_space<vmem>>) attributes {dimension_semantics = [#tpu.dimension_semantics<arbitrary>, #tpu.dimension_semantics<arbitrary>], iteration_bounds = array<i64: 1, 1>, scalar_prefetch = 0 : i64, scratch_operands = 0 : i64, tpu.core_type = #tpu.core_type<tc>, window_params = [{transform_indices = @transform_0, window_bounds = array<i64: 8, 512>}, {transform_indices = @transform_1, window_bounds = array<i64: 8, 512>}, {transform_indices = @transform_2, window_bounds = array<i64: 1, 8, 512>}]} {
    %c0_i32 = arith.constant 0 : i32
    %0 = arith.cmpi eq, %arg1, %c0_i32 : i32
    %1 = arith.extui %0 : i1 to i32
    %c0_i32_0 = arith.constant 0 : i32
    %2 = arith.cmpi ne, %1, %c0_i32_0 : i32
    scf.if %2 {
      %cst_11 = arith.constant 0.000000e+00 : f32
      %27 = vector.broadcast %cst_11 : f32 to vector<1x8x512xf32>
      %c0_12 = arith.constant 0 : index
      %c0_13 = arith.constant 0 : index
      %c0_14 = arith.constant 0 : index
      %28 = vector.load %arg4[%c0_12, %c0_13, %c0_14] : memref<1x8x512xf32, #tpu.memory_space<vmem>>, vector<1x8x512xf32>
      tpu.vector_store %arg4[%c0_12, %c0_13, %c0_14], %27 {strides = array<i32>} : memref<1x8x512xf32, #tpu.memory_space<vmem>>, vector<1x8x512xf32>,
    } else {
    }
    %c0 = arith.constant 0 : index
    %c0_1 = arith.constant 0 : index
    %3 = vector.load %arg2[%c0, %c0_1] : memref<8x512xf32, #tpu.memory_space<vmem>>, vector<8x512xf32>
    %c0_2 = arith.constant 0 : index
    %c0_3 = arith.constant 0 : index
    %4 = vector.load %arg3[%c0_2, %c0_3] : memref<8x512xf32, #tpu.memory_space<vmem>>, vector<8x512xf32>
    %5 = arith.subf %3, %4 : vector<8x512xf32>
    %6 = math.absf %5 : vector<8x512xf32>
    %c1_i32 = arith.constant 1 : i32
    %7 = arith.muli %arg0, %c1_i32 : i32
    %8 = arith.addi %7, %arg1 : i32
    %c8_i32 = arith.constant 8 : i32
    %9 = arith.muli %8, %c8_i32 : i32
    %10 = tpu.iota {dimensions = array<i32: 0>} : vector<8x1xi32>
    %11 = vector.broadcast %9 : i32 to vector<8x1xi32>
    %12 = arith.addi %11, %10 : vector<8x1xi32>
    %c4_i32 = arith.constant 4 : i32
    %13 = vector.broadcast %c4_i32 : i32 to vector<8x1xi32>
    %14 = arith.cmpi slt, %12, %13 : vector<8x1xi32>
    %cst = arith.constant 0.000000e+00 : f32
    %15 = vector.shape_cast %14 : vector<8x1xi1> to vector<8x1xi1>
    %16 = vector.broadcast %15 : vector<8x1xi1> to vector<8x512xi1>
    %17 = vector.broadcast %cst : f32 to vector<8x512xf32>
    %18 = arith.select %16, %6, %17 : vector<8x512xi1>, vector<8x512xf32>
    %c0_4 = arith.constant 0 : index
    %c0_5 = arith.constant 0 : index
    %c0_6 = arith.constant 0 : index
    %19 = vector.load %arg4[%c0_4, %c0_5, %c0_6] : memref<1x8x512xf32, #tpu.memory_space<vmem>>, vector<1x8x512xf32>
    %20 = vector.shape_cast %19 : vector<1x8x512xf32> to vector<8x512xf32>
    %21 = vector.shape_cast %18 : vector<8x512xf32> to vector<1x8x512xf32>
    %cst_7 = arith.constant dense<0.000000e+00> : vector<8x512xf32>
    %22 = vector.multi_reduction <add>, %21, %cst_7 [0] : vector<1x8x512xf32> to vector<8x512xf32>
    %23 = arith.addf %20, %22 : vector<8x512xf32>
    %c0_8 = arith.constant 0 : index
    %c0_9 = arith.constant 0 : index
    %c0_10 = arith.constant 0 : index
    %24 = vector.load %arg4[%c0_8, %c0_9, %c0_10] : memref<1x8x512xf32, #tpu.memory_space<vmem>>, vector<1x8x512xf32>
    %25 = vector.shape_cast %24 : vector<1x8x512xf32> to vector<8x512xf32>
    %26 = vector.shape_cast %23 : vector<8x512xf32> to vector<1x8x512xf32>
    tpu.vector_store %arg4[%c0_8, %c0_9, %c0_10], %26 {strides = array<i32>} : memref<1x8x512xf32, #tpu.memory_space<vmem>>, vector<1x8x512xf32>,
    return
  }
  func.func @transform_0(%arg0: i32, %arg1: i32) -> (i32, i32) {
    %c1_i32 = arith.constant 1 : i32
    %0 = arith.muli %arg0, %c1_i32 : i32
    %1 = arith.addi %0, %arg1 : i32
    %c0_i32 = arith.constant 0 : i32
    %c0_i32_0 = arith.constant 0 : i32
    return %1, %c0_i32 : i32, i32
  }
  func.func @transform_1(%arg0: i32, %arg1: i32) -> (i32, i32) {
    %c1_i32 = arith.constant 1 : i32
    %0 = arith.muli %arg0, %c1_i32 : i32
    %1 = arith.addi %0, %arg1 : i32
    %c0_i32 = arith.constant 0 : i32
    %c0_i32_0 = arith.constant 0 : i32
    return %1, %c0_i32 : i32, i32
  }
  func.func @transform_2(%arg0: i32, %arg1: i32) -> (i32, i32, i32) {
    %c0_i32 = arith.constant 0 : i32
    %c0_i32_0 = arith.constant 0 : i32
    %c0_i32_1 = arith.constant 0 : i32
    return %arg0, %c0_i32, %c0_i32_0 : i32, i32, i32
  }
}

</mosaic_0001>

<llo_original>
// kernel: tpu_custom_call.1
$region0: #{tpu_custom_call.1}
  #allocation0 [shape = 'u32[]', space=smem, size = 0x4, offset = 0x4, fixed_abs, tag = 'smem constant byte address 0x4 - core index']
  #allocation1 [shape = 'u32[144,128]{1,0:T(1,128)}', space=vmem, size = 0x12000, scoped, tag = 'internal scratch']
  %s0 = inlined_call_operand.hbm [shape: f32[4,512], index: 0, kind: input, shape index: {}]
  %s1 = inlined_call_operand.hbm [shape: f32[4,512], index: 1, kind: input, shape index: {}]
  %s2 = inlined_call_operand.hbm [shape: f32[1,8,512], index: 2, kind: output, shape index: {}]
  %s3 = sld [smem:[#allocation0]]
  $region30: #{tpu_custom_call.1} parent=0
    _
  %s5 = ssub.s32 1, %s3
  %s6 = scalar_select 0, %s5, %s3
  $region1: #{tpu_custom_call.1} parent=0
    #allocation2 [shape = 'u8[16384]{0}', space=vmem, size = 0x4000, scoped, tag = 'input window, operand 0, single buffered']
    #allocation3 [shape = 's32[1]{0}', space=sflag, size = 0x4, scoped, tag = 'scoped memory for tpu_custom_call.1']
    #allocation4 [shape = 's32[1]{0}', space=sflag, size = 0x4, scoped, tag = 'scoped memory for tpu_custom_call.1']
    #allocation5 [shape = 'u8[16384]{0}', space=vmem, size = 0x4000, scoped, tag = 'input window, operand 1, single buffered']
    #allocation6 [shape = 's32[1]{0}', space=sflag, size = 0x4, scoped, tag = 'scoped memory for tpu_custom_call.1']
    #allocation7 [shape = 'u8[16384]{0}', space=vmem, size = 0x4000, scoped, tag = 'output window, operand 0, single buffered']
    %7 = vsyncpa [#allocation3], 0
    %8 = vsyncpa [#allocation6], 0
    %9 = vsyncpa [#allocation4], 0
    // Predicated region
    $region2: #{tpu_custom_call.1} parent=1 // pred_check
      _
    $region3: #{tpu_custom_call.1} parent=1 // pred_check_branch
      %11 = sbr.rel (0) target = $region5
    $region4: #{tpu_custom_call.1} parent=1 // pred_region
      %s12 = sadd.s32 0, 0
      %s13 = smul.u32 2, %s12
      %s14 = ssub.s32 1, %s13
      %s15 = smul.u32 64, %s14
      %s16 = smul.u32 %s15, 4
      %s18 = ssub.s32 512, %s16
      %19 = vsyncadd [#allocation3], %s18
      %p20 = scmp.ne.s32.totalorder 0, %s16
      %s21 = smul.addr %s13, 4
      %s22 = smul.addr %s21, 64
      %s23 = scalar_lea.hbm %s0, %s22
      %s24 = smul.u32 16, %s14
      %s25 = sshll.u32 [#allocation2], 4
      %s26 = int_to_ptr.vmem [resolvable:$true] %s25
      %s27 = sshll.u32 %s24, 4
      %31 = dma.hbm_to_vmem [thread:$0]  (%p20), %s23, %s27, %s26, [#allocation3], 256, 256, 16
    $region5: #{tpu_custom_call.1} parent=1 // pred_fallthru
      _
    // Predicated region
    $region6: #{tpu_custom_call.1} parent=1 // pred_check
      _
    $region7: #{tpu_custom_call.1} parent=1 // pred_check_branch
      %33 = sbr.rel (0) target = $region9
    $region8: #{tpu_custom_call.1} parent=1 // pred_region
      %s34 = sadd.s32 0, 0
      %s35 = smul.u32 2, %s34
      %s36 = ssub.s32 1, %s35
      %s37 = smul.u32 64, %s36
      %s38 = smul.u32 %s37, 4
      %s40 = ssub.s32 512, %s38
      %41 = vsyncadd [#allocation6], %s40
      %p42 = scmp.ne.s32.totalorder 0, %s38
      %s43 = smul.addr %s35, 4
      %s44 = smul.addr %s43, 64
      %s45 = scalar_lea.hbm %s1, %s44
      %s46 = smul.u32 16, %s36
      %s47 = sshll.u32 [#allocation5], 4
      %s48 = int_to_ptr.vmem [resolvable:$true] %s47
      %s49 = sshll.u32 %s46, 4
      %53 = dma.hbm_to_vmem [thread:$0]  (%p42), %s45, %s49, %s48, [#allocation6], 256, 256, 16
    $region9: #{tpu_custom_call.1} parent=1 // pred_fallthru
      _
    // Predicated region
    $region10: #{tpu_custom_call.1} parent=1 // pred_check
      _
    $region11: #{tpu_custom_call.1} parent=1 // pred_check_branch
      %55 = sbr.rel (0) target = $region13
    $region12: #{tpu_custom_call.1} parent=1 // pred_region
      %56 = dma.done [#allocation3], 512
    $region13: #{tpu_custom_call.1} parent=1 // pred_fallthru
      _
    // Predicated region
    $region14: #{tpu_custom_call.1} parent=1 // pred_check
      _
    $region15: #{tpu_custom_call.1} parent=1 // pred_check_branch
      %58 = sbr.rel (0) target = $region17
    $region16: #{tpu_custom_call.1} parent=1 // pred_region
      %59 = dma.done [#allocation6], 512
    $region17: #{tpu_custom_call.1} parent=1 // pred_fallthru
      _
    %s60 = sadd.s32 0, 0
    %s61 = smul.u32 2, %s60
    %s62 = ssub.s32 1, %s61
    %s63 = smul.u32 64, %s62
    %s64 = smul.u32 %s63, 4
    %s65 = sadd.s32 0, 0
    %s66 = smul.u32 2, %s65
    %s67 = ssub.s32 1, %s66
    %s68 = smul.u32 64, %s67
    %s69 = smul.u32 %s68, 4
    %p70 = scmp.eq.s32.totalorder 0, 0
    // Predicated region
    $region18: #{tpu_custom_call.1} parent=1 // pred_check
      %p71 = pneg %p70
    $region19: #{tpu_custom_call.1} parent=1 // pred_check_branch
      %73 = sbr.rel (%p71) target = $region21
    $region20: #{tpu_custom_call.1} parent=1 // pred_region
      %74 = vst [vmem:[#allocation7] sm:$0xff] 0.0
      %75 = vst [vmem:[#allocation7 + $0x8] sm:$0xff] 0.0
      %76 = vst [vmem:[#allocation7 + $0x10] sm:$0xff] 0.0
      %77 = vst [vmem:[#allocation7 + $0x18] sm:$0xff] 0.0
    $region21: #{tpu_custom_call.1} parent=1 // pred_fallthru
      _
    %v78 = vld [vmem:[#allocation2] sm:$0xff]
    %v79 = vld [vmem:[#allocation2 + $0x8] sm:$0xff]
    %v80 = vld [vmem:[#allocation2 + $0x10] sm:$0xff]
    %v81 = vld [vmem:[#allocation2 + $0x18] sm:$0xff]
    %v82 = vld [vmem:[#allocation5] sm:$0xff]
    %v83 = vld [vmem:[#allocation5 + $0x8] sm:$0xff]
    %v84 = vld [vmem:[#allocation5 + $0x10] sm:$0xff]
    %v85 = vld [vmem:[#allocation5 + $0x18] sm:$0xff]
    %v86 = vsub.f32 %v78, %v82
    %v87 = vsub.f32 %v79, %v83
    %v88 = vsub.f32 %v80, %v84
    %v89 = vsub.f32 %v81, %v85
    %v90 = vand.u32 2147483647, %v86
    %v91 = vand.u32 2147483647, %v87
    %v92 = vand.u32 2147483647, %v88
    %v93 = vand.u32 2147483647, %v89
    %s94 = sadd.s32 0, 0
    %s95 = smul.u32 %s94, 8
    %v96 = vlaneseq
    %v97 = vshrl.u32 %v96, 7
    %v98 = vstv %s95
    %v99 = vadd.s32 %v98, %v97
    %vm100 = vcmp.lt.s32.totalorder %v99, 4
    %v101 = vsel %vm100, 1, 0
    %vm102 = vcmp.eq.s32.totalorder %v101, 1
    %v107 = vcombine.low %v90, %v92
    %v108 = vcombine.high %v90, %v92
    %v109 = vcombine.low %v91, %v93
    %v110 = vcombine.high %v91, %v93
    %v115 = vsel %vm102, %v107, 0.0
    %v116 = vsel %vm102, %v108, 0.0
    %v117 = vsel %vm102, %v109, 0.0
    %v118 = vsel %vm102, %v110, 0.0
    %v119 = vld [vmem:[#allocation7] sm:$0xff]
    %v120 = vld [vmem:[#allocation7 + $0x8] sm:$0xff]
    %v121 = vld [vmem:[#allocation7 + $0x10] sm:$0xff]
    %v122 = vld [vmem:[#allocation7 + $0x18] sm:$0xff]
    %v123 = vadd.f32 %v115, 0.0
    %v124 = vadd.f32 %v116, 0.0
    %v125 = vadd.f32 %v117, 0.0
    %v126 = vadd.f32 %v118, 0.0
    %v127 = vadd.f32 %v119, %v123
    %v128 = vadd.f32 %v120, %v124
    %v129 = vadd.f32 %v121, %v125
    %v130 = vadd.f32 %v122, %v126
    %131 = vst [vmem:[#allocation7] sm:$0xff] %v127
    %132 = vst [vmem:[#allocation7 + $0x8] sm:$0xff] %v128
    %133 = vst [vmem:[#allocation7 + $0x10] sm:$0xff] %v129
    %134 = vst [vmem:[#allocation7 + $0x18] sm:$0xff] %v130
    // Predicated region
    $region22: #{tpu_custom_call.1} parent=1 // pred_check
      _
    $region23: #{tpu_custom_call.1} parent=1 // pred_check_branch
      %136 = sbr.rel (0) target = $region25
    $region24: #{tpu_custom_call.1} parent=1 // pred_region
      %s138 = ssub.s32 512, 512
      %139 = vsyncadd [#allocation4], %s138
      %s141 = sshll.u32 [#allocation7], 4
      %s142 = int_to_ptr.vmem [resolvable:$true] %s141
      %144 = dma.vmem_to_hbm [thread:$0]  %s142, 512, %s2, [#allocation4]
    $region25: #{tpu_custom_call.1} parent=1 // pred_fallthru
      _
    // Predicated region
    $region26: #{tpu_custom_call.1} parent=1 // pred_check
      _
    $region27: #{tpu_custom_call.1} parent=1 // pred_check_branch
      %146 = sbr.rel (0) target = $region29
    $region28: #{tpu_custom_call.1} parent=1 // pred_region
      %147 = dma.done [#allocation4], 512
    $region29: #{tpu_custom_call.1} parent=1 // pred_fallthru
      _
    %148 = vsyncpa [#allocation3], 1
    %149 = vsyncpa [#allocation6], 1
    %150 = vsyncpa [#allocation4], 1

</llo_original>
